<compile_context>
chip_gen: v5e
topology: v5e:2x2
jax: 0.10.0
libtpu: 0.0.40
codegen_flags: <defaults>
</compile_context>

<pallas_src>
import functools

import jax
import jax.numpy as jnp
from jax import lax
from jax.experimental import pallas as pl
from jax.experimental.pallas import tpu as pltpu

K = 5      # conv kernel size
PAD = 2    # padding each side (kernel_size=5, stride=1 -> "same")


def _residual_block_kernel(x_ref, w1_ref, w2_ref, s1_ref, b1_ref, s2_ref,
                           b2_ref, o_ref, *, compute_dtype):
    # x_ref : (Nb, L, Cin)    channels-last input block (unpadded)
    # w1_ref: (K*Cin, Cout)   conv1 weights, im2col layout
    # w2_ref: (K*Cout, Cout)  conv2 weights, im2col layout
    # s*/b* : (1, Cout)       folded eval-mode BatchNorm scale / bias
    # o_ref : (Nb, L, Cout)
    nb, L, cin = x_ref.shape
    cout = o_ref.shape[-1]
    m = nb * L

    x = x_ref[...].astype(jnp.float32)                      # (Nb, L, Cin)

    def im2col(v):
        # v: (Nb, L, C) f32 -> (Nb*L, K*C) slab of the K shifted, zero-padded
        # slices, built entirely in registers (no VMEM scratch round trip).
        c = v.shape[-1]
        zp = jnp.zeros((nb, PAD, c), jnp.float32)
        vp = jnp.concatenate([zp, v, zp], axis=1)            # (Nb, L+2*PAD, C)
        slab = jnp.concatenate([vp[:, k:k + L, :] for k in range(K)], axis=-1)
        return slab.reshape(m, K * c).astype(compute_dtype)

    # ---- conv1: one (M, K*Cin) @ (K*Cin, Cout) matmul, then BN1 + ReLU ----
    h = jnp.dot(im2col(x), w1_ref[...], preferred_element_type=jnp.float32)
    h = jnp.maximum(h * s1_ref[...] + b1_ref[...], 0.0)     # (M, Cout), f32

    # ---- conv2: one matmul (h never leaves vregs), then BN2 ----
    out = jnp.dot(im2col(h.reshape(nb, L, cout)), w2_ref[...],
                  preferred_element_type=jnp.float32)
    out = out * s2_ref[...] + b2_ref[...]

    # identity shortcut (stride=1, Cin == Cout) + final ReLU
    out = out + x.reshape(m, cin)
    o_ref[...] = jnp.maximum(out, 0.0).reshape(nb, L, cout).astype(o_ref.dtype)


def residual_block(x_ncl, w1, w2, bn1_scale, bn1_bias, bn2_scale, bn2_bias,
                   *, batch_block=None, compute_dtype=jnp.float32):
    """x_ncl: (N, Cin, L) float32 (PyTorch NCL layout). Returns (N, Cout, L)."""
    N, Cin, L = x_ncl.shape
    Kk, Cin_w, Cout = w1.shape
    assert Kk == K and Cin_w == Cin
    assert Cin == Cout, "identity-shortcut path only (stride=1, in==out)"

    if batch_block is None:
        # Default: pack the whole batch into one grid step (per-step overhead
        # dominates at small shapes).  For large N, pass N//2 to give both
        # v7x TensorCores a grid step.
        batch_block = N
    if N % batch_block != 0:
        raise ValueError(f"batch_block={batch_block} must divide N={N}")
    grid_n = N // batch_block

    x_nlc = jnp.transpose(x_ncl, (0, 2, 1))                  # (N, L, Cin)

    # im2col weight layout: (K, Cin, Cout) -> (K*Cin, Cout); cast once here so
    # bf16 operands (v6e/v7x) don't pay a per-grid-step cast.
    w1_col = w1.reshape(K * Cin, Cout).astype(compute_dtype)
    w2_col = w2.reshape(K * Cout, Cout).astype(compute_dtype)

    kernel = functools.partial(_residual_block_kernel, compute_dtype=compute_dtype)

    grid_spec = pltpu.PrefetchScalarGridSpec(
        num_scalar_prefetch=0,
        grid=(grid_n,),
        in_specs=[
            pl.BlockSpec((batch_block, L, Cin), lambda n: (n, 0, 0)),
            pl.BlockSpec((K * Cin, Cout),       lambda n: (0, 0)),
            pl.BlockSpec((K * Cout, Cout),      lambda n: (0, 0)),
            pl.BlockSpec((1, Cout),             lambda n: (0, 0)),
            pl.BlockSpec((1, Cout),             lambda n: (0, 0)),
            pl.BlockSpec((1, Cout),             lambda n: (0, 0)),
            pl.BlockSpec((1, Cout),             lambda n: (0, 0)),
        ],
        out_specs=pl.BlockSpec((batch_block, L, Cout), lambda n: (n, 0, 0)),
    )

    out_nlc = pl.pallas_call(
        kernel,
        out_shape=jax.ShapeDtypeStruct((N, L, Cout), x_ncl.dtype),
        grid_spec=grid_spec,
        compiler_params=pltpu.CompilerParams(
            dimension_semantics=("parallel",)),
    )(x_nlc, w1_col, w2_col, bn1_scale, bn1_bias, bn2_scale, bn2_bias)

    return jnp.transpose(out_nlc, (0, 2, 1))                 # back to NCL


def reference(x_ncl, w1, w2, s1, b1, s2, b2):
    """Pure-JAX reference matching the PyTorch forward (eval-mode BN)."""
    w1_oik = jnp.transpose(w1, (2, 1, 0))   # (Cout, Cin, K)
    w2_oik = jnp.transpose(w2, (2, 1, 0))
    dn = ('NCH', 'OIH', 'NCH')
    y = lax.conv_general_dilated(x_ncl, w1_oik, (1,), [(PAD, PAD)],
                                 dimension_numbers=dn)
    y = y * s1[0][None, :, None] + b1[0][None, :, None]
    y = jnp.maximum(y, 0.0)
    z = lax.conv_general_dilated(y, w2_oik, (1,), [(PAD, PAD)],
                                 dimension_numbers=dn)
    z = z * s2[0][None, :, None] + b2[0][None, :, None]
    z = z + x_ncl
    return jnp.maximum(z, 0.0)


if __name__ == "__main__":
    # ResidualBlock(in_channels=64, out_channels=64, stride=1)
    N, C, L = 2, 64, 16
    key = jax.random.PRNGKey(0)
    kx, kw1, kw2, kg1, kb1, km1, kv1, kg2, kb2, km2, kv2 = jax.random.split(key, 11)

    x = jax.random.normal(kx, (N, C, L), jnp.float32)

    # conv weights stored tap-major (K, Cin, Cout); deterministic init
    w1 = jax.random.normal(kw1, (K, C, C), jnp.float32) * 0.05
    w2 = jax.random.normal(kw2, (K, C, C), jnp.float32) * 0.05

    eps = 1e-5

    def fold_bn(kg, kb, km, kv):
        gamma = 1.0 + 0.1 * jax.random.normal(kg, (C,), jnp.float32)
        beta = 0.1 * jax.random.normal(kb, (C,), jnp.float32)
        rmean = 0.1 * jax.random.normal(km, (C,), jnp.float32)
        rvar = jnp.abs(1.0 + 0.1 * jax.random.normal(kv, (C,), jnp.float32))
        scale = gamma / jnp.sqrt(rvar + eps)
        bias = beta - rmean * scale
        return scale.reshape(1, C), bias.reshape(1, C)

    s1, b1 = fold_bn(kg1, kb1, km1, kv1)
    s2, b2 = fold_bn(kg2, kb2, km2, kv2)

    ref = jax.block_until_ready(reference(x, w1, w2, s1, b1, s2, b2))

    # Single Pallas kernel run: whole batch in one grid step, f32 MXU operands.
    out = jax.block_until_ready(residual_block(x, w1, w2, s1, b1, s2, b2))
    assert out.shape == (N, C, L)
    err = jnp.max(jnp.abs(out - ref))
    assert jnp.allclose(out, ref, rtol=1e-4, atol=1e-4), f"max abs err {err}"

    print("KERNEL_OK")
</pallas_src>

<mosaic_0001>
module attributes {stable_mosaic.version = 11 : i64} {
  func.func @_residual_block_kernel(%arg0: i32, %arg1: memref<2x16x64xf32, #tpu.memory_space<vmem>>, %arg2: memref<320x64xf32, #tpu.memory_space<vmem>>, %arg3: memref<320x64xf32, #tpu.memory_space<vmem>>, %arg4: memref<1x64xf32, #tpu.memory_space<vmem>>, %arg5: memref<1x64xf32, #tpu.memory_space<vmem>>, %arg6: memref<1x64xf32, #tpu.memory_space<vmem>>, %arg7: memref<1x64xf32, #tpu.memory_space<vmem>>, %arg8: memref<2x16x64xf32, #tpu.memory_space<vmem>>) attributes {dimension_semantics = [#tpu.dimension_semantics<parallel>], iteration_bounds = array<i64: 1>, scalar_prefetch = 0 : i64, scratch_operands = 0 : i64, tpu.core_type = #tpu.core_type<tc>, window_params = [{transform_indices = @transform_0, window_bounds = array<i64: 2, 16, 64>}, {pipeline_mode = #tpu.pipeline_mode<synchronous>, transform_indices = @transform_1, window_bounds = array<i64: 320, 64>}, {pipeline_mode = #tpu.pipeline_mode<synchronous>, transform_indices = @transform_2, window_bounds = array<i64: 320, 64>}, {pipeline_mode = #tpu.pipeline_mode<synchronous>, transform_indices = @transform_3, window_bounds = array<i64: 1, 64>}, {pipeline_mode = #tpu.pipeline_mode<synchronous>, transform_indices = @transform_4, window_bounds = array<i64: 1, 64>}, {pipeline_mode = #tpu.pipeline_mode<synchronous>, transform_indices = @transform_5, window_bounds = array<i64: 1, 64>}, {pipeline_mode = #tpu.pipeline_mode<synchronous>, transform_indices = @transform_6, window_bounds = array<i64: 1, 64>}, {transform_indices = @transform_7, window_bounds = array<i64: 2, 16, 64>}]} {
    %c0 = arith.constant 0 : index
    %c0_0 = arith.constant 0 : index
    %c0_1 = arith.constant 0 : index
    %0 = vector.load %arg1[%c0, %c0_0, %c0_1] : memref<2x16x64xf32, #tpu.memory_space<vmem>>, vector<2x16x64xf32>
    %cst = arith.constant 0.000000e+00 : f32
    %1 = vector.broadcast %cst : f32 to vector<2x2x64xf32>
    %2 = tpu.concatenate %1, %0, %1 in 1 : vector<2x2x64xf32>, vector<2x16x64xf32>, vector<2x2x64xf32> -> vector<2x20x64xf32>
    %3 = vector.extract_strided_slice %2 {offsets = [0, 0, 0], sizes = [2, 16, 64], strides = [1, 1, 1]} : vector<2x20x64xf32> to vector<2x16x64xf32>
    %4 = vector.extract_strided_slice %2 {offsets = [0, 1, 0], sizes = [2, 16, 64], strides = [1, 1, 1]} : vector<2x20x64xf32> to vector<2x16x64xf32>
    %5 = vector.extract_strided_slice %2 {offsets = [0, 2, 0], sizes = [2, 16, 64], strides = [1, 1, 1]} : vector<2x20x64xf32> to vector<2x16x64xf32>
    %6 = vector.extract_strided_slice %2 {offsets = [0, 3, 0], sizes = [2, 16, 64], strides = [1, 1, 1]} : vector<2x20x64xf32> to vector<2x16x64xf32>
    %7 = vector.extract_strided_slice %2 {offsets = [0, 4, 0], sizes = [2, 16, 64], strides = [1, 1, 1]} : vector<2x20x64xf32> to vector<2x16x64xf32>
    %8 = tpu.concatenate %3, %4, %5, %6, %7 in 2 : vector<2x16x64xf32>, vector<2x16x64xf32>, vector<2x16x64xf32>, vector<2x16x64xf32>, vector<2x16x64xf32> -> vector<2x16x320xf32>
    %9 = vector.shape_cast %8 : vector<2x16x320xf32> to vector<32x320xf32>
    %c0_2 = arith.constant 0 : index
    %c0_3 = arith.constant 0 : index
    %10 = vector.load %arg2[%c0_2, %c0_3] : memref<320x64xf32, #tpu.memory_space<vmem>>, vector<320x64xf32>
    %cst_4 = arith.constant dense<0.000000e+00> : vector<32x64xf32>
    %11 = tpu.matmul %9, %10, %cst_4 {dimension_numbers = #tpu.dot_dimension_numbers<[1], [0], [0], [1], [0, 0, 1, 1], [], []>} : vector<32x320xf32>, vector<320x64xf32>, vector<32x64xf32> -> vector<32x64xf32>
    %c0_5 = arith.constant 0 : index
    %c0_6 = arith.constant 0 : index
    %12 = vector.load %arg4[%c0_5, %c0_6] : memref<1x64xf32, #tpu.memory_space<vmem>>, vector<1x64xf32>
    %13 = vector.broadcast %12 : vector<1x64xf32> to vector<32x64xf32>
    %14 = arith.mulf %11, %13 : vector<32x64xf32>
    %c0_7 = arith.constant 0 : index
    %c0_8 = arith.constant 0 : index
    %15 = vector.load %arg5[%c0_7, %c0_8] : memref<1x64xf32, #tpu.memory_space<vmem>>, vector<1x64xf32>
    %16 = vector.broadcast %15 : vector<1x64xf32> to vector<32x64xf32>
    %17 = arith.addf %14, %16 : vector<32x64xf32>
    %cst_9 = arith.constant 0.000000e+00 : f32
    %18 = vector.broadcast %cst_9 : f32 to vector<32x64xf32>
    %19 = arith.maximumf %17, %18 : vector<32x64xf32>
    %20 = vector.shape_cast %19 : vector<32x64xf32> to vector<2x16x64xf32>
    %cst_10 = arith.constant 0.000000e+00 : f32
    %21 = vector.broadcast %cst_10 : f32 to vector<2x2x64xf32>
    %22 = tpu.concatenate %21, %20, %21 in 1 : vector<2x2x64xf32>, vector<2x16x64xf32>, vector<2x2x64xf32> -> vector<2x20x64xf32>
    %23 = vector.extract_strided_slice %22 {offsets = [0, 0, 0], sizes = [2, 16, 64], strides = [1, 1, 1]} : vector<2x20x64xf32> to vector<2x16x64xf32>
    %24 = vector.extract_strided_slice %22 {offsets = [0, 1, 0], sizes = [2, 16, 64], strides = [1, 1, 1]} : vector<2x20x64xf32> to vector<2x16x64xf32>
    %25 = vector.extract_strided_slice %22 {offsets = [0, 2, 0], sizes = [2, 16, 64], strides = [1, 1, 1]} : vector<2x20x64xf32> to vector<2x16x64xf32>
    %26 = vector.extract_strided_slice %22 {offsets = [0, 3, 0], sizes = [2, 16, 64], strides = [1, 1, 1]} : vector<2x20x64xf32> to vector<2x16x64xf32>
    %27 = vector.extract_strided_slice %22 {offsets = [0, 4, 0], sizes = [2, 16, 64], strides = [1, 1, 1]} : vector<2x20x64xf32> to vector<2x16x64xf32>
    %28 = tpu.concatenate %23, %24, %25, %26, %27 in 2 : vector<2x16x64xf32>, vector<2x16x64xf32>, vector<2x16x64xf32>, vector<2x16x64xf32>, vector<2x16x64xf32> -> vector<2x16x320xf32>
    %29 = vector.shape_cast %28 : vector<2x16x320xf32> to vector<32x320xf32>
    %c0_11 = arith.constant 0 : index
    %c0_12 = arith.constant 0 : index
    %30 = vector.load %arg3[%c0_11, %c0_12] : memref<320x64xf32, #tpu.memory_space<vmem>>, vector<320x64xf32>
    %cst_13 = arith.constant dense<0.000000e+00> : vector<32x64xf32>
    %31 = tpu.matmul %29, %30, %cst_13 {dimension_numbers = #tpu.dot_dimension_numbers<[1], [0], [0], [1], [0, 0, 1, 1], [], []>} : vector<32x320xf32>, vector<320x64xf32>, vector<32x64xf32> -> vector<32x64xf32>
    %c0_14 = arith.constant 0 : index
    %c0_15 = arith.constant 0 : index
    %32 = vector.load %arg6[%c0_14, %c0_15] : memref<1x64xf32, #tpu.memory_space<vmem>>, vector<1x64xf32>
    %33 = vector.broadcast %32 : vector<1x64xf32> to vector<32x64xf32>
    %34 = arith.mulf %31, %33 : vector<32x64xf32>
    %c0_16 = arith.constant 0 : index
    %c0_17 = arith.constant 0 : index
    %35 = vector.load %arg7[%c0_16, %c0_17] : memref<1x64xf32, #tpu.memory_space<vmem>>, vector<1x64xf32>
    %36 = vector.broadcast %35 : vector<1x64xf32> to vector<32x64xf32>
    %37 = arith.addf %34, %36 : vector<32x64xf32>
    %38 = vector.shape_cast %0 : vector<2x16x64xf32> to vector<32x64xf32>
    %39 = arith.addf %37, %38 : vector<32x64xf32>
    %cst_18 = arith.constant 0.000000e+00 : f32
    %40 = vector.broadcast %cst_18 : f32 to vector<32x64xf32>
    %41 = arith.maximumf %39, %40 : vector<32x64xf32>
    %42 = vector.shape_cast %41 : vector<32x64xf32> to vector<2x16x64xf32>
    %c0_19 = arith.constant 0 : index
    %c0_20 = arith.constant 0 : index
    %c0_21 = arith.constant 0 : index
    %43 = vector.load %arg8[%c0_19, %c0_20, %c0_21] : memref<2x16x64xf32, #tpu.memory_space<vmem>>, vector<2x16x64xf32>
    tpu.vector_store %arg8[%c0_19, %c0_20, %c0_21], %42 {strides = array<i32>} : memref<2x16x64xf32, #tpu.memory_space<vmem>>, vector<2x16x64xf32>,
    return
  }
  func.func @transform_0(%arg0: i32) -> (i32, i32, i32) {
    %c0_i32 = arith.constant 0 : i32
    %c0_i32_0 = arith.constant 0 : i32
    %c0_i32_1 = arith.constant 0 : i32
    return %arg0, %c0_i32, %c0_i32_0 : i32, i32, i32
  }
  func.func @transform_1(%arg0: i32) -> (i32, i32) {
    %c0_i32 = arith.constant 0 : i32
    %c0_i32_0 = arith.constant 0 : i32
    %c0_i32_1 = arith.constant 0 : i32
    return %c0_i32, %c0_i32_0 : i32, i32
  }
  func.func @transform_2(%arg0: i32) -> (i32, i32) {
    %c0_i32 = arith.constant 0 : i32
    %c0_i32_0 = arith.constant 0 : i32
    %c0_i32_1 = arith.constant 0 : i32
    return %c0_i32, %c0_i32_0 : i32, i32
  }
  func.func @transform_3(%arg0: i32) -> (i32, i32) {
    %c0_i32 = arith.constant 0 : i32
    %c0_i32_0 = arith.constant 0 : i32
    %c0_i32_1 = arith.constant 0 : i32
    return %c0_i32, %c0_i32_0 : i32, i32
  }
  func.func @transform_4(%arg0: i32) -> (i32, i32) {
    %c0_i32 = arith.constant 0 : i32
    %c0_i32_0 = arith.constant 0 : i32
    %c0_i32_1 = arith.constant 0 : i32
    return %c0_i32, %c0_i32_0 : i32, i32
  }
  func.func @transform_5(%arg0: i32) -> (i32, i32) {
    %c0_i32 = arith.constant 0 : i32
    %c0_i32_0 = arith.constant 0 : i32
    %c0_i32_1 = arith.constant 0 : i32
    return %c0_i32, %c0_i32_0 : i32, i32
  }
  func.func @transform_6(%arg0: i32) -> (i32, i32) {
    %c0_i32 = arith.constant 0 : i32
    %c0_i32_0 = arith.constant 0 : i32
    %c0_i32_1 = arith.constant 0 : i32
    return %c0_i32, %c0_i32_0 : i32, i32
  }
  func.func @transform_7(%arg0: i32) -> (i32, i32, i32) {
    %c0_i32 = arith.constant 0 : i32
    %c0_i32_0 = arith.constant 0 : i32
    %c0_i32_1 = arith.constant 0 : i32
    return %arg0, %c0_i32, %c0_i32_0 : i32, i32, i32
  }
}

</mosaic_0001>

<llo_original>
// kernel: tpu_custom_call.1
$region0: #{tpu_custom_call.1}
  #allocation0 [shape = 'u32[]', space=smem, size = 0x4, offset = 0x4, fixed_abs, tag = 'smem constant byte address 0x4 - core index']
  #allocation1 [shape = 'u32[72,128]{1,0:T(1,128)}', space=vmem, size = 0x9000, scoped, tag = 'internal scratch']
  %s0 = inlined_call_operand.vmem [shape: f32[2,16,64], index: 0, kind: input, shape index: {}]
  %s1 = inlined_call_operand.vmem [shape: f32[320,64], index: 1, kind: input, shape index: {}]
  %s2 = inlined_call_operand.vmem [shape: f32[320,64], index: 2, kind: input, shape index: {}]
  %s3 = inlined_call_operand.vmem [shape: f32[1,64], index: 3, kind: input, shape index: {}]
  %s4 = inlined_call_operand.vmem [shape: f32[1,64], index: 4, kind: input, shape index: {}]
  %s5 = inlined_call_operand.vmem [shape: f32[1,64], index: 5, kind: input, shape index: {}]
  %s6 = inlined_call_operand.vmem [shape: f32[1,64], index: 6, kind: input, shape index: {}]
  %s7 = inlined_call_operand.hbm [shape: f32[2,16,64], index: 7, kind: output, shape index: {}]
  %s8 = sld [smem:[#allocation0]]
  $region38: #{tpu_custom_call.1} parent=0
    _
  %s10 = ssub.s32 1, %s8
  %s11 = scalar_select 0, %s10, %s8
  $region1: #{tpu_custom_call.1} parent=0
    #allocation2 [shape = 'u8[16384]{0}', space=vmem, size = 0x4000, scoped, tag = 'output window, operand 0, single buffered']
    #allocation3 [shape = 's32[1]{0}', space=sflag, size = 0x4, scoped, tag = 'scoped memory for tpu_custom_call.1']
    %12 = vsyncpa [#allocation3], 0
    // Predicated region
    $region2: #{tpu_custom_call.1} parent=1 // pred_check
      _
    $region3: #{tpu_custom_call.1} parent=1 // pred_check_branch
      %14 = sbr.rel (0) target = $region5
    $region4: #{tpu_custom_call.1} parent=1 // pred_region
      _
    $region5: #{tpu_custom_call.1} parent=1 // pred_fallthru
      _
    // Predicated region
    $region6: #{tpu_custom_call.1} parent=1 // pred_check
      _
    $region7: #{tpu_custom_call.1} parent=1 // pred_check_branch
      %16 = sbr.rel (0) target = $region9
    $region8: #{tpu_custom_call.1} parent=1 // pred_region
      _
    $region9: #{tpu_custom_call.1} parent=1 // pred_fallthru
      _
    // Predicated region
    $region10: #{tpu_custom_call.1} parent=1 // pred_check
      _
    $region11: #{tpu_custom_call.1} parent=1 // pred_check_branch
      %18 = sbr.rel (0) target = $region13
    $region12: #{tpu_custom_call.1} parent=1 // pred_region
      _
    $region13: #{tpu_custom_call.1} parent=1 // pred_fallthru
      _
    // Predicated region
    $region14: #{tpu_custom_call.1} parent=1 // pred_check
      _
    $region15: #{tpu_custom_call.1} parent=1 // pred_check_branch
      %20 = sbr.rel (0) target = $region17
    $region16: #{tpu_custom_call.1} parent=1 // pred_region
      _
    $region17: #{tpu_custom_call.1} parent=1 // pred_fallthru
      _
    // Predicated region
    $region18: #{tpu_custom_call.1} parent=1 // pred_check
      _
    $region19: #{tpu_custom_call.1} parent=1 // pred_check_branch
      %22 = sbr.rel (0) target = $region21
    $region20: #{tpu_custom_call.1} parent=1 // pred_region
      _
    $region21: #{tpu_custom_call.1} parent=1 // pred_fallthru
      _
    // Predicated region
    $region22: #{tpu_custom_call.1} parent=1 // pred_check
      _
    $region23: #{tpu_custom_call.1} parent=1 // pred_check_branch
      %24 = sbr.rel (0) target = $region25
    $region24: #{tpu_custom_call.1} parent=1 // pred_region
      _
    $region25: #{tpu_custom_call.1} parent=1 // pred_fallthru
      _
    // Predicated region
    $region26: #{tpu_custom_call.1} parent=1 // pred_check
      _
    $region27: #{tpu_custom_call.1} parent=1 // pred_check_branch
      %26 = sbr.rel (0) target = $region29
    $region28: #{tpu_custom_call.1} parent=1 // pred_region
      _
    $region29: #{tpu_custom_call.1} parent=1 // pred_fallthru
      _
    %v27 = vld [vmem:[%s0] sm:$0xff]
    %v28 = vld [vmem:[%s0 + $0x8] sm:$0xff]
    %v29 = vld [vmem:[%s0 + $0x10] sm:$0xff]
    %v30 = vld [vmem:[%s0 + $0x18] sm:$0xff]
    %vm35 = vcmask 1041408
    %v36 = vrot.slane %v27, 6
    %v37 = vrot.slane %v28, 6
    %v38 = vsel %vm35, %v36, %v37
    %v39 = vrot.slane %v29, 6
    %v40 = vrot.slane %v30, 6
    %v41 = vsel %vm35, %v39, %v40
    %v48 = vsel %vm35, 0.0, %v36
    %v49 = vsel %vm35, 0.0, %v39
    %v50 = vsel %vm35, %v37, 0.0
    %v51 = vsel %vm35, %v40, 0.0
    %vm56 = vcmask 1046528
    %v57 = vrot.slane %v48, 1
    %v58 = vrot.slane %v38, 1
    %v59 = vsel %vm56, %v57, %v58
    %v60 = vrot.slane %v50, 1
    %v61 = vsel %vm56, %v58, %v60
    %v62 = vrot.slane %v49, 1
    %v63 = vrot.slane %v41, 1
    %v64 = vsel %vm56, %v62, %v63
    %v65 = vrot.slane %v51, 1
    %v66 = vsel %vm56, %v63, %v65
    %67 = vrot.lane.b32.xlu0 %v59, 64
    %v68 = vpop.permute.xlu0 %67
    %69 = vrot.lane.b32.xlu0 %v61, 64
    %v70 = vpop.permute.xlu0 %69
    %71 = vrot.lane.b32.xlu0 %v64, 64
    %v72 = vpop.permute.xlu0 %71
    %73 = vrot.lane.b32.xlu0 %v66, 64
    %v74 = vpop.permute.xlu0 %73
    %vm79 = vcmask 1045504
    %v80 = vrot.slane %v48, 2
    %v81 = vrot.slane %v38, 2
    %v82 = vsel %vm79, %v80, %v81
    %v83 = vrot.slane %v50, 2
    %v84 = vsel %vm79, %v81, %v83
    %v85 = vrot.slane %v49, 2
    %v86 = vrot.slane %v41, 2
    %v87 = vsel %vm79, %v85, %v86
    %v88 = vrot.slane %v51, 2
    %v89 = vsel %vm79, %v86, %v88
    %vm94 = vcmask 1044480
    %v95 = vrot.slane %v48, 3
    %v96 = vrot.slane %v38, 3
    %v97 = vsel %vm94, %v95, %v96
    %v98 = vrot.slane %v50, 3
    %v99 = vsel %vm94, %v96, %v98
    %v100 = vrot.slane %v49, 3
    %v101 = vrot.slane %v41, 3
    %v102 = vsel %vm94, %v100, %v101
    %v103 = vrot.slane %v51, 3
    %v104 = vsel %vm94, %v101, %v103
    %105 = vrot.lane.b32.xlu0 %v97, 64
    %v106 = vpop.permute.xlu0 %105
    %107 = vrot.lane.b32.xlu0 %v99, 64
    %v108 = vpop.permute.xlu0 %107
    %109 = vrot.lane.b32.xlu0 %v102, 64
    %v110 = vpop.permute.xlu0 %109
    %111 = vrot.lane.b32.xlu0 %v104, 64
    %v112 = vpop.permute.xlu0 %111
    %vm117 = vcmask 1043456
    %v118 = vrot.slane %v48, 4
    %v119 = vrot.slane %v38, 4
    %v120 = vsel %vm117, %v118, %v119
    %v121 = vrot.slane %v50, 4
    %v122 = vsel %vm117, %v119, %v121
    %v123 = vrot.slane %v49, 4
    %v124 = vrot.slane %v41, 4
    %v125 = vsel %vm117, %v123, %v124
    %v126 = vrot.slane %v51, 4
    %v127 = vsel %vm117, %v124, %v126
    %vm128 = vcmask 523264
    %v129 = vsel %vm128, %v48, %v68
    %v130 = vsel %vm128, %v38, %v70
    %v131 = vsel %vm128, %v49, %v72
    %v132 = vsel %vm128, %v41, %v74
    %v133 = vsel %vm128, %v82, %v106
    %v134 = vsel %vm128, %v84, %v108
    %v135 = vsel %vm128, %v87, %v110
    %v136 = vsel %vm128, %v89, %v112
    %v137 = vld [vmem:[%s1] sm:$0xff]
    %v138 = vld [vmem:[%s1 + $0x8] sm:$0xff]
    %v139 = vld [vmem:[%s1 + $0x10] sm:$0xff]
    %v140 = vld [vmem:[%s1 + $0x18] sm:$0xff]
    %v141 = vld [vmem:[%s1 + $0x20] sm:$0xff]
    %v142 = vld [vmem:[%s1 + $0x28] sm:$0xff]
    %v143 = vld [vmem:[%s1 + $0x30] sm:$0xff]
    %v144 = vld [vmem:[%s1 + $0x38] sm:$0xff]
    %v145 = vld [vmem:[%s1 + $0x40] sm:$0xff]
    %v146 = vld [vmem:[%s1 + $0x48] sm:$0xff]
    %v147 = vld [vmem:[%s1 + $0x50] sm:$0xff]
    %v148 = vld [vmem:[%s1 + $0x58] sm:$0xff]
    %v149 = vld [vmem:[%s1 + $0x60] sm:$0xff]
    %v150 = vld [vmem:[%s1 + $0x68] sm:$0xff]
    %v151 = vld [vmem:[%s1 + $0x70] sm:$0xff]
    %v152 = vld [vmem:[%s1 + $0x78] sm:$0xff]
    %v153 = vld [vmem:[%s1 + $0x80] sm:$0xff]
    %v154 = vld [vmem:[%s1 + $0x88] sm:$0xff]
    %v155 = vld [vmem:[%s1 + $0x90] sm:$0xff]
    %v156 = vld [vmem:[%s1 + $0x98] sm:$0xff]
    %v157 = vld [vmem:[%s1 + $0xa0] sm:$0xff]
    %v158 = vld [vmem:[%s1 + $0xa8] sm:$0xff]
    %v159 = vld [vmem:[%s1 + $0xb0] sm:$0xff]
    %v160 = vld [vmem:[%s1 + $0xb8] sm:$0xff]
    %v161 = vld [vmem:[%s1 + $0xc0] sm:$0xff]
    %v162 = vld [vmem:[%s1 + $0xc8] sm:$0xff]
    %v163 = vld [vmem:[%s1 + $0xd0] sm:$0xff]
    %v164 = vld [vmem:[%s1 + $0xd8] sm:$0xff]
    %v165 = vld [vmem:[%s1 + $0xe0] sm:$0xff]
    %v166 = vld [vmem:[%s1 + $0xe8] sm:$0xff]
    %v167 = vld [vmem:[%s1 + $0xf0] sm:$0xff]
    %v168 = vld [vmem:[%s1 + $0xf8] sm:$0xff]
    %v169 = vld [vmem:[%s1 + $0x100] sm:$0xff]
    %v170 = vld [vmem:[%s1 + $0x108] sm:$0xff]
    %v171 = vld [vmem:[%s1 + $0x110] sm:$0xff]
    %v172 = vld [vmem:[%s1 + $0x118] sm:$0xff]
    %v173 = vld [vmem:[%s1 + $0x120] sm:$0xff]
    %v174 = vld [vmem:[%s1 + $0x128] sm:$0xff]
    %v175 = vld [vmem:[%s1 + $0x130] sm:$0xff]
    %v176 = vld [vmem:[%s1 + $0x138] sm:$0xff]
    %v177 = vsel %vm128, %v120, 0
    %v179 = vsel %vm128, %v122, 0
    %v181 = vsel %vm128, %v125, 0
    %v183 = vsel %vm128, %v127, 0
    %185 = vmatpush.msra.mxu0 %v152
    %186 = vmatpush.msra.mxu0 %v151
    %187 = vmatpush.msra.mxu0 %v150
    %188 = vmatpush.msra.mxu0 %v149
    %189 = vmatpush.msra.mxu0 %v148
    %190 = vmatpush.msra.mxu0 %v147
    %191 = vmatpush.msra.mxu0 %v146
    %192 = vmatpush.msra.mxu0 %v145
    %193 = vmatpush.msra.mxu0 %v144
    %194 = vmatpush.msra.mxu0 %v143
    %195 = vmatpush.msra.mxu0 %v142
    %196 = vmatpush.msra.mxu0 %v141
    %197 = vmatpush.msra.mxu0 %v140
    %198 = vmatpush.msra.mxu0 %v139
    %199 = vmatpush.msra.mxu0 %v138
    %200 = vmatpush.msra.mxu0 %v137
    %201 = vmatmul.f32.gmra.mxu0 %v129
    %v202 = vpop.f32.mrf.mxu0
    %v203 = vadd.f32 0.0, %v202
    %204 = vmatmul.f32.gmra.mxu0 %v130
    %v205 = vpop.f32.mrf.mxu0
    %v206 = vadd.f32 0.0, %v205
    %207 = vmatmul.f32.gmra.mxu0 %v131
    %v208 = vpop.f32.mrf.mxu0
    %v209 = vadd.f32 0.0, %v208
    %210 = vmatmul.f32.gmra.mxu0 %v132
    %v211 = vpop.f32.mrf.mxu0
    %v212 = vadd.f32 0.0, %v211
    %213 = vdwg.mxu0
    %214 = vmatpush.msra.mxu0 %v168
    %215 = vmatpush.msra.mxu0 %v167
    %216 = vmatpush.msra.mxu0 %v166
    %217 = vmatpush.msra.mxu0 %v165
    %218 = vmatpush.msra.mxu0 %v164
    %219 = vmatpush.msra.mxu0 %v163
    %220 = vmatpush.msra.mxu0 %v162
    %221 = vmatpush.msra.mxu0 %v161
    %222 = vmatpush.msra.mxu0 %v160
    %223 = vmatpush.msra.mxu0 %v159
    %224 = vmatpush.msra.mxu0 %v158
    %225 = vmatpush.msra.mxu0 %v157
    %226 = vmatpush.msra.mxu0 %v156
    %227 = vmatpush.msra.mxu0 %v155
    %228 = vmatpush.msra.mxu0 %v154
    %229 = vmatpush.msra.mxu0 %v153
    %230 = vmatmul.f32.gmra.mxu0 %v133
    %v231 = vpop.f32.mrf.mxu0
    %v232 = vadd.f32 %v203, %v231
    %233 = vmatmul.f32.gmra.mxu0 %v134
    %v234 = vpop.f32.mrf.mxu0
    %v235 = vadd.f32 %v206, %v234
    %236 = vmatmul.f32.gmra.mxu0 %v135
    %v237 = vpop.f32.mrf.mxu0
    %v238 = vadd.f32 %v209, %v237
    %239 = vmatmul.f32.gmra.mxu0 %v136
    %v240 = vpop.f32.mrf.mxu0
    %v241 = vadd.f32 %v212, %v240
    %242 = vdwg.mxu0
    %243 = vmatpush.msra.mxu0 0.0
    %244 = vmatpush.msra.mxu0 0.0
    %245 = vmatpush.msra.mxu0 0.0
    %246 = vmatpush.msra.mxu0 0.0
    %247 = vmatpush.msra.mxu0 0.0
    %248 = vmatpush.msra.mxu0 0.0
    %249 = vmatpush.msra.mxu0 0.0
    %250 = vmatpush.msra.mxu0 0.0
    %251 = vmatpush.msra.mxu0 %v176
    %252 = vmatpush.msra.mxu0 %v175
    %253 = vmatpush.msra.mxu0 %v174
    %254 = vmatpush.msra.mxu0 %v173
    %255 = vmatpush.msra.mxu0 %v172
    %256 = vmatpush.msra.mxu0 %v171
    %257 = vmatpush.msra.mxu0 %v170
    %258 = vmatpush.msra.mxu0 %v169
    %259 = vmatmul.f32.gmra.mxu0 %v177
    %v260 = vpop.f32.mrf.mxu0
    %v261 = vadd.f32 %v232, %v260
    %262 = vmatmul.f32.gmra.mxu0 %v179
    %v263 = vpop.f32.mrf.mxu0
    %v264 = vadd.f32 %v235, %v263
    %265 = vmatmul.f32.gmra.mxu0 %v181
    %v266 = vpop.f32.mrf.mxu0
    %v267 = vadd.f32 %v238, %v266
    %268 = vmatmul.f32.gmra.mxu0 %v183
    %v269 = vpop.f32.mrf.mxu0
    %v270 = vadd.f32 %v241, %v269
    %271 = vdwg.mxu0
    %v272 = vld [vmem:[%s3] sm:$0x1]
    %v274 = vperm.slane %v272, 0
    %v276 = vmul.f32 %v261, %v274
    %v277 = vmul.f32 %v264, %v274
    %v278 = vmul.f32 %v267, %v274
    %v279 = vmul.f32 %v270, %v274
    %v280 = vld [vmem:[%s4] sm:$0x1]
    %v282 = vperm.slane %v280, 0
    %v284 = vadd.f32 %v276, %v282
    %v285 = vadd.f32 %v277, %v282
    %v286 = vadd.f32 %v278, %v282
    %v287 = vadd.f32 %v279, %v282
    %v288 = vmax.f32 %v284, 0.0
    %v289 = vmax.f32 %v285, 0.0
    %v290 = vmax.f32 %v286, 0.0
    %v291 = vmax.f32 %v287, 0.0
    %v296 = vrot.slane %v288, 6
    %v297 = vrot.slane %v289, 6
    %v298 = vsel %vm35, %v296, %v297
    %v299 = vrot.slane %v290, 6
    %v300 = vrot.slane %v291, 6
    %v301 = vsel %vm35, %v299, %v300
    %v308 = vsel %vm35, 0.0, %v296
    %v309 = vsel %vm35, 0.0, %v299
    %v310 = vsel %vm35, %v297, 0.0
    %v311 = vsel %vm35, %v300, 0.0
    %v316 = vrot.slane %v308, 1
    %v317 = vrot.slane %v298, 1
    %v318 = vsel %vm56, %v316, %v317
    %v319 = vrot.slane %v310, 1
    %v320 = vsel %vm56, %v317, %v319
    %v321 = vrot.slane %v309, 1
    %v322 = vrot.slane %v301, 1
    %v323 = vsel %vm56, %v321, %v322
    %v324 = vrot.slane %v311, 1
    %v325 = vsel %vm56, %v322, %v324
    %326 = vrot.lane.b32.xlu0 %v318, 64
    %v327 = vpop.permute.xlu0 %326
    %328 = vrot.lane.b32.xlu0 %v320, 64
    %v329 = vpop.permute.xlu0 %328
    %330 = vrot.lane.b32.xlu0 %v323, 64
    %v331 = vpop.permute.xlu0 %330
    %332 = vrot.lane.b32.xlu0 %v325, 64
    %v333 = vpop.permute.xlu0 %332
    %v338 = vrot.slane %v308, 2
    %v339 = vrot.slane %v298, 2
    %v340 = vsel %vm79, %v338, %v339
    %v341 = vrot.slane %v310, 2
    %v342 = vsel %vm79, %v339, %v341
    %v343 = vrot.slane %v309, 2
    %v344 = vrot.slane %v301, 2
    %v345 = vsel %vm79, %v343, %v344
    %v346 = vrot.slane %v311, 2
    %v347 = vsel %vm79, %v344, %v346
    %v352 = vrot.slane %v308, 3
    %v353 = vrot.slane %v298, 3
    %v354 = vsel %vm94, %v352, %v353
    %v355 = vrot.slane %v310, 3
    %v356 = vsel %vm94, %v353, %v355
    %v357 = vrot.slane %v309, 3
    %v358 = vrot.slane %v301, 3
    %v359 = vsel %vm94, %v357, %v358
    %v360 = vrot.slane %v311, 3
    %v361 = vsel %vm94, %v358, %v360
    %362 = vrot.lane.b32.xlu0 %v354, 64
    %v363 = vpop.permute.xlu0 %362
    %364 = vrot.lane.b32.xlu0 %v356, 64
    %v365 = vpop.permute.xlu0 %364
    %366 = vrot.lane.b32.xlu0 %v359, 64
    %v367 = vpop.permute.xlu0 %366
    %368 = vrot.lane.b32.xlu0 %v361, 64
    %v369 = vpop.permute.xlu0 %368
    %v374 = vrot.slane %v308, 4
    %v375 = vrot.slane %v298, 4
    %v376 = vsel %vm117, %v374, %v375
    %v377 = vrot.slane %v310, 4
    %v378 = vsel %vm117, %v375, %v377
    %v379 = vrot.slane %v309, 4
    %v380 = vrot.slane %v301, 4
    %v381 = vsel %vm117, %v379, %v380
    %v382 = vrot.slane %v311, 4
    %v383 = vsel %vm117, %v380, %v382
    %v384 = vsel %vm128, %v308, %v327
    %v385 = vsel %vm128, %v298, %v329
    %v386 = vsel %vm128, %v309, %v331
    %v387 = vsel %vm128, %v301, %v333
    %v388 = vsel %vm128, %v340, %v363
    %v389 = vsel %vm128, %v342, %v365
    %v390 = vsel %vm128, %v345, %v367
    %v391 = vsel %vm128, %v347, %v369
    %v392 = vld [vmem:[%s2] sm:$0xff]
    %v393 = vld [vmem:[%s2 + $0x8] sm:$0xff]
    %v394 = vld [vmem:[%s2 + $0x10] sm:$0xff]
    %v395 = vld [vmem:[%s2 + $0x18] sm:$0xff]
    %v396 = vld [vmem:[%s2 + $0x20] sm:$0xff]
    %v397 = vld [vmem:[%s2 + $0x28] sm:$0xff]
    %v398 = vld [vmem:[%s2 + $0x30] sm:$0xff]
    %v399 = vld [vmem:[%s2 + $0x38] sm:$0xff]
    %v400 = vld [vmem:[%s2 + $0x40] sm:$0xff]
    %v401 = vld [vmem:[%s2 + $0x48] sm:$0xff]
    %v402 = vld [vmem:[%s2 + $0x50] sm:$0xff]
    %v403 = vld [vmem:[%s2 + $0x58] sm:$0xff]
    %v404 = vld [vmem:[%s2 + $0x60] sm:$0xff]
    %v405 = vld [vmem:[%s2 + $0x68] sm:$0xff]
    %v406 = vld [vmem:[%s2 + $0x70] sm:$0xff]
    %v407 = vld [vmem:[%s2 + $0x78] sm:$0xff]
    %v408 = vld [vmem:[%s2 + $0x80] sm:$0xff]
    %v409 = vld [vmem:[%s2 + $0x88] sm:$0xff]
    %v410 = vld [vmem:[%s2 + $0x90] sm:$0xff]
    %v411 = vld [vmem:[%s2 + $0x98] sm:$0xff]
    %v412 = vld [vmem:[%s2 + $0xa0] sm:$0xff]
    %v413 = vld [vmem:[%s2 + $0xa8] sm:$0xff]
    %v414 = vld [vmem:[%s2 + $0xb0] sm:$0xff]
    %v415 = vld [vmem:[%s2 + $0xb8] sm:$0xff]
    %v416 = vld [vmem:[%s2 + $0xc0] sm:$0xff]
    %v417 = vld [vmem:[%s2 + $0xc8] sm:$0xff]
    %v418 = vld [vmem:[%s2 + $0xd0] sm:$0xff]
    %v419 = vld [vmem:[%s2 + $0xd8] sm:$0xff]
    %v420 = vld [vmem:[%s2 + $0xe0] sm:$0xff]
    %v421 = vld [vmem:[%s2 + $0xe8] sm:$0xff]
    %v422 = vld [vmem:[%s2 + $0xf0] sm:$0xff]
    %v423 = vld [vmem:[%s2 + $0xf8] sm:$0xff]
    %v424 = vld [vmem:[%s2 + $0x100] sm:$0xff]
    %v425 = vld [vmem:[%s2 + $0x108] sm:$0xff]
    %v426 = vld [vmem:[%s2 + $0x110] sm:$0xff]
    %v427 = vld [vmem:[%s2 + $0x118] sm:$0xff]
    %v428 = vld [vmem:[%s2 + $0x120] sm:$0xff]
    %v429 = vld [vmem:[%s2 + $0x128] sm:$0xff]
    %v430 = vld [vmem:[%s2 + $0x130] sm:$0xff]
    %v431 = vld [vmem:[%s2 + $0x138] sm:$0xff]
    %v432 = vsel %vm128, %v376, 0
    %v434 = vsel %vm128, %v378, 0
    %v436 = vsel %vm128, %v381, 0
    %v438 = vsel %vm128, %v383, 0
    %440 = vmatpush.msra.mxu0 %v407
    %441 = vmatpush.msra.mxu0 %v406
    %442 = vmatpush.msra.mxu0 %v405
    %443 = vmatpush.msra.mxu0 %v404
    %444 = vmatpush.msra.mxu0 %v403
    %445 = vmatpush.msra.mxu0 %v402
    %446 = vmatpush.msra.mxu0 %v401
    %447 = vmatpush.msra.mxu0 %v400
    %448 = vmatpush.msra.mxu0 %v399
    %449 = vmatpush.msra.mxu0 %v398
    %450 = vmatpush.msra.mxu0 %v397
    %451 = vmatpush.msra.mxu0 %v396
    %452 = vmatpush.msra.mxu0 %v395
    %453 = vmatpush.msra.mxu0 %v394
    %454 = vmatpush.msra.mxu0 %v393
    %455 = vmatpush.msra.mxu0 %v392
    %456 = vmatmul.f32.gmra.mxu0 %v384
    %v457 = vpop.f32.mrf.mxu0
    %v458 = vadd.f32 0.0, %v457
    %459 = vmatmul.f32.gmra.mxu0 %v385
    %v460 = vpop.f32.mrf.mxu0
    %v461 = vadd.f32 0.0, %v460
    %462 = vmatmul.f32.gmra.mxu0 %v386
    %v463 = vpop.f32.mrf.mxu0
    %v464 = vadd.f32 0.0, %v463
    %465 = vmatmul.f32.gmra.mxu0 %v387
    %v466 = vpop.f32.mrf.mxu0
    %v467 = vadd.f32 0.0, %v466
    %468 = vdwg.mxu0
    %469 = vmatpush.msra.mxu0 %v423
    %470 = vmatpush.msra.mxu0 %v422
    %471 = vmatpush.msra.mxu0 %v421
    %472 = vmatpush.msra.mxu0 %v420
    %473 = vmatpush.msra.mxu0 %v419
    %474 = vmatpush.msra.mxu0 %v418
    %475 = vmatpush.msra.mxu0 %v417
    %476 = vmatpush.msra.mxu0 %v416
    %477 = vmatpush.msra.mxu0 %v415
    %478 = vmatpush.msra.mxu0 %v414
    %479 = vmatpush.msra.mxu0 %v413
    %480 = vmatpush.msra.mxu0 %v412
    %481 = vmatpush.msra.mxu0 %v411
    %482 = vmatpush.msra.mxu0 %v410
    %483 = vmatpush.msra.mxu0 %v409
    %484 = vmatpush.msra.mxu0 %v408
    %485 = vmatmul.f32.gmra.mxu0 %v388
    %v486 = vpop.f32.mrf.mxu0
    %v487 = vadd.f32 %v458, %v486
    %488 = vmatmul.f32.gmra.mxu0 %v389
    %v489 = vpop.f32.mrf.mxu0
    %v490 = vadd.f32 %v461, %v489
    %491 = vmatmul.f32.gmra.mxu0 %v390
    %v492 = vpop.f32.mrf.mxu0
    %v493 = vadd.f32 %v464, %v492
    %494 = vmatmul.f32.gmra.mxu0 %v391
    %v495 = vpop.f32.mrf.mxu0
    %v496 = vadd.f32 %v467, %v495
    %497 = vdwg.mxu0
    %498 = vmatpush.msra.mxu0 0.0
    %499 = vmatpush.msra.mxu0 0.0
    %500 = vmatpush.msra.mxu0 0.0
    %501 = vmatpush.msra.mxu0 0.0
    %502 = vmatpush.msra.mxu0 0.0
    %503 = vmatpush.msra.mxu0 0.0
    %504 = vmatpush.msra.mxu0 0.0
    %505 = vmatpush.msra.mxu0 0.0
    %506 = vmatpush.msra.mxu0 %v431
    %507 = vmatpush.msra.mxu0 %v430
    %508 = vmatpush.msra.mxu0 %v429
    %509 = vmatpush.msra.mxu0 %v428
    %510 = vmatpush.msra.mxu0 %v427
    %511 = vmatpush.msra.mxu0 %v426
    %512 = vmatpush.msra.mxu0 %v425
    %513 = vmatpush.msra.mxu0 %v424
    %514 = vmatmul.f32.gmra.mxu0 %v432
    %v515 = vpop.f32.mrf.mxu0
    %v516 = vadd.f32 %v487, %v515
    %517 = vmatmul.f32.gmra.mxu0 %v434
    %v518 = vpop.f32.mrf.mxu0
    %v519 = vadd.f32 %v490, %v518
    %520 = vmatmul.f32.gmra.mxu0 %v436
    %v521 = vpop.f32.mrf.mxu0
    %v522 = vadd.f32 %v493, %v521
    %523 = vmatmul.f32.gmra.mxu0 %v438
    %v524 = vpop.f32.mrf.mxu0
    %v525 = vadd.f32 %v496, %v524
    %526 = vdwg.mxu0
    %v527 = vld [vmem:[%s5] sm:$0x1]
    %v529 = vperm.slane %v527, 0
    %v531 = vmul.f32 %v516, %v529
    %v532 = vmul.f32 %v519, %v529
    %v533 = vmul.f32 %v522, %v529
    %v534 = vmul.f32 %v525, %v529
    %v535 = vld [vmem:[%s6] sm:$0x1]
    %v537 = vperm.slane %v535, 0
    %v539 = vadd.f32 %v531, %v537
    %v540 = vadd.f32 %v532, %v537
    %v541 = vadd.f32 %v533, %v537
    %v542 = vadd.f32 %v534, %v537
    %v543 = vadd.f32 %v539, %v27
    %v544 = vadd.f32 %v540, %v28
    %v545 = vadd.f32 %v541, %v29
    %v546 = vadd.f32 %v542, %v30
    %v547 = vmax.f32 %v543, 0.0
    %v548 = vmax.f32 %v544, 0.0
    %v549 = vmax.f32 %v545, 0.0
    %v550 = vmax.f32 %v546, 0.0
    %551 = vst.msk [vmem:[#allocation2] sm:$0xff] %vm128, %v547
    %552 = vst.msk [vmem:[#allocation2 + $0x8] sm:$0xff] %vm128, %v548
    %553 = vst.msk [vmem:[#allocation2 + $0x10] sm:$0xff] %vm128, %v549
    %554 = vst.msk [vmem:[#allocation2 + $0x18] sm:$0xff] %vm128, %v550
    // Predicated region
    $region30: #{tpu_custom_call.1} parent=1 // pred_check
      _
    $region31: #{tpu_custom_call.1} parent=1 // pred_check_branch
      %556 = sbr.rel (0) target = $region33
    $region32: #{tpu_custom_call.1} parent=1 // pred_region
      %558 = vsyncadd [#allocation3], 0
      %s559 = sshll.u32 [#allocation2], 4
      %s560 = int_to_ptr.vmem [resolvable:$true] %s559
      %s561 = sshll.u32 %s7, 4
      %s562 = int_to_ptr.hbm [resolvable:$true] %s561
      %567 = dma.vmem_to_hbm [thread:$0]  %s560, 512, %s562, [#allocation3], 128, 128, 8
    $region33: #{tpu_custom_call.1} parent=1 // pred_fallthru
      _
    // Predicated region
    $region34: #{tpu_custom_call.1} parent=1 // pred_check
      _
    $region35: #{tpu_custom_call.1} parent=1 // pred_check_branch
      %569 = sbr.rel (0) target = $region37
    $region36: #{tpu_custom_call.1} parent=1 // pred_region
      %571 = dma.done [#allocation3], 512
    $region37: #{tpu_custom_call.1} parent=1 // pred_fallthru
      _
    %572 = vsyncpa [#allocation3], 1

</llo_original>
